<compile_context>
chip_gen: v5e
topology: v5e:2x2
jax: 0.10.0
libtpu: 0.0.40
codegen_flags: <defaults>
</compile_context>

<pallas_src>
import jax
import jax.numpy as jnp
from jax.experimental import pallas as pl
from jax.experimental.pallas import tpu as pltpu


def _h_kernel(x_ref, y_ref, m_ref, o_ref):
    # dyout = (x - y) * mask   -- whole tile, VPU elementwise
    o_ref[...] = (x_ref[...] - y_ref[...]) * m_ref[...]


_LANE = 128
_SMALL_ELEMS = 1 << 16                 # <= 64K elems: gridless single block
_TARGET_TILE_BYTES = 2 * 1024 * 1024   # ~2 MiB per array per grid step


def _gridless_call(xs, ys, ms, out_dtype):
    """One block, whole slab resident in VMEM, no grid (tiny-input fast path)."""
    vmem = pl.BlockSpec(memory_space=pltpu.MemorySpace.VMEM)
    return pl.pallas_call(
        _h_kernel,
        out_shape=jax.ShapeDtypeStruct(xs.shape, out_dtype),
        in_specs=[vmem, vmem, vmem],
        out_specs=vmem,
    )(xs, ys, ms)


def model_h_forward(x, y, mask):
    """Compute (x - y) * mask with a Pallas TPU kernel.

    x, y, mask: identically shaped arrays (any rank), e.g. NCHW.
    """
    assert x.shape == y.shape == mask.shape, "Model_H expects same-shaped inputs"
    orig_shape = x.shape
    out_dtype = x.dtype
    itemsize = jnp.dtype(out_dtype).itemsize

    # Explicit dtype alignment (e.g. boolean masks) -> no surprise promotion.
    y = y.astype(out_dtype)
    mask = mask.astype(out_dtype)

    n = x.size
    xf, yf, mf = x.reshape(-1), y.reshape(-1), mask.reshape(-1)

    # ---------- small-input fast path: single gridless VMEM block ----------
    if n <= _SMALL_ELEMS:
        n_pad = max(_LANE, ((n + _LANE - 1) // _LANE) * _LANE)
        if n_pad != n:
            pad = n_pad - n
            xf = jnp.pad(xf, (0, pad))
            yf = jnp.pad(yf, (0, pad))
            mf = jnp.pad(mf, (0, pad))
        rows = n_pad // _LANE
        out = _gridless_call(
            xf.reshape(rows, _LANE),
            yf.reshape(rows, _LANE),
            mf.reshape(rows, _LANE),
            out_dtype,
        )
        flat = out.reshape(-1)
        if n_pad != n:
            flat = flat[:n]
        return flat.reshape(orig_shape)

    # ---------- large-input tiled path ----------
    # Pad only if the element count is not lane-aligned (rare for NCHW).
    padded = (n % _LANE) != 0
    if padded:
        n_work = ((n + _LANE - 1) // _LANE) * _LANE
        pad = n_work - n
        xf = jnp.pad(xf, (0, pad))
        yf = jnp.pad(yf, (0, pad))
        mf = jnp.pad(mf, (0, pad))
    else:
        n_work = n

    # Widest last dim (multiple of 128) that divides n_work exactly.
    lanes = _LANE
    for cand in (4096, 2048, 1024, 512, 256):
        if n_work % cand == 0:
            lanes = cand
            break
    rows = n_work // lanes

    # Tile rows: ~_TARGET_TILE_BYTES per array per block, multiple of 8.
    tr = _TARGET_TILE_BYTES // (lanes * itemsize)
    tr = max(8, min(tr, rows))
    tr = max(8, (tr // 8) * 8)
    grid = (pl.cdiv(rows, tr),)

    spec = pl.BlockSpec((tr, lanes), lambda i: (i, 0))
    xs = xf.reshape(rows, lanes)
    ys = yf.reshape(rows, lanes)
    ms = mf.reshape(rows, lanes)

    out = pl.pallas_call(
        _h_kernel,
        out_shape=jax.ShapeDtypeStruct((rows, lanes), out_dtype),
        grid_spec=pltpu.PrefetchScalarGridSpec(
            num_scalar_prefetch=0,
            grid=grid,
            in_specs=[spec, spec, spec],
            out_specs=spec,
        ),
        compiler_params=pltpu.CompilerParams(
            dimension_semantics=("parallel",),
            vmem_limit_bytes=32 * 1024 * 1024,
        ),
    )(xs, ys, ms)

    flat = out.reshape(-1)
    if padded:
        flat = flat[:n]
    return flat.reshape(orig_shape)


if __name__ == "__main__":
    # Model_H.__init__ only stores metadata (dim_obs, dim_obs_channel); the
    # forward pass has no learned parameters, so nothing to initialize.
    key = jax.random.PRNGKey(0)

    def make_inputs(shape, k):
        kx, ky, km = jax.random.split(k, 3)
        x = jax.random.normal(kx, shape, dtype=jnp.float32)
        y = jax.random.normal(ky, shape, dtype=jnp.float32)
        mask = (jax.random.uniform(km, shape) > 0.5).astype(jnp.float32)
        return x, y, mask

    k1, k2, k3 = jax.random.split(key, 3)

    # 1) Small NCHW shape (exercises the gridless single-block path).
    shape_small = (2, 4, 16, 16)
    x, y, m = make_inputs(shape_small, k1)
    out = jax.block_until_ready(model_h_forward(x, y, m))
    ref = (x - y) * m
    assert out.shape == shape_small and out.dtype == x.dtype
    assert jnp.allclose(out, ref, atol=1e-6, rtol=1e-6)

    # 2) Odd, non-lane-aligned shape (exercises the pad path).
    shape_odd = (2, 3, 17, 19)
    x, y, m = make_inputs(shape_odd, k2)
    out = jax.block_until_ready(model_h_forward(x, y, m))
    ref = (x - y) * m
    assert out.shape == shape_odd
    assert jnp.allclose(out, ref, atol=1e-6, rtol=1e-6)

    # 3) Larger NCHW shape (exercises the tiled, wide-lane path: lanes=4096,
    #    2 MiB blocks, 4 grid steps).
    shape_big = (4, 8, 256, 256)
    x, y, m = make_inputs(shape_big, k3)
    out = jax.block_until_ready(model_h_forward(x, y, m))
    ref = (x - y) * m
    assert out.shape == shape_big
    assert jnp.allclose(out, ref, atol=1e-6, rtol=1e-6)

    print("KERNEL_OK")
</pallas_src>

<mosaic_0001>
module attributes {stable_mosaic.version = 11 : i64} {
  func.func @_h_kernel(%arg0: memref<16x128xf32, #tpu.memory_space<vmem>>, %arg1: memref<16x128xf32, #tpu.memory_space<vmem>>, %arg2: memref<16x128xf32, #tpu.memory_space<vmem>>, %arg3: memref<16x128xf32, #tpu.memory_space<vmem>>) attributes {dimension_semantics = [], scalar_prefetch = 0 : i64, scratch_operands = 0 : i64, tpu.core_type = #tpu.core_type<tc>} {
    %c0 = arith.constant 0 : index
    %c0_0 = arith.constant 0 : index
    %0 = vector.load %arg0[%c0, %c0_0] : memref<16x128xf32, #tpu.memory_space<vmem>>, vector<16x128xf32>
    %c0_1 = arith.constant 0 : index
    %c0_2 = arith.constant 0 : index
    %1 = vector.load %arg1[%c0_1, %c0_2] : memref<16x128xf32, #tpu.memory_space<vmem>>, vector<16x128xf32>
    %2 = arith.subf %0, %1 : vector<16x128xf32>
    %c0_3 = arith.constant 0 : index
    %c0_4 = arith.constant 0 : index
    %3 = vector.load %arg2[%c0_3, %c0_4] : memref<16x128xf32, #tpu.memory_space<vmem>>, vector<16x128xf32>
    %4 = arith.mulf %2, %3 : vector<16x128xf32>
    %c0_5 = arith.constant 0 : index
    %c0_6 = arith.constant 0 : index
    %5 = vector.load %arg3[%c0_5, %c0_6] : memref<16x128xf32, #tpu.memory_space<vmem>>, vector<16x128xf32>
    tpu.vector_store %arg3[%c0_5, %c0_6], %4 {strides = array<i32>} : memref<16x128xf32, #tpu.memory_space<vmem>>, vector<16x128xf32>,
    return
  }
}

</mosaic_0001>

<llo_original>
// kernel: tpu_custom_call.1
$region0: #{tpu_custom_call.1}
  #allocation0 [shape = 'u32[]', space=smem, size = 0x4, offset = 0x4, fixed_abs, tag = 'smem constant byte address 0x4 - core index']
  #allocation1 [shape = 'u32[72,128]{1,0:T(1,128)}', space=vmem, size = 0x9000, scoped, tag = 'internal scratch']
  %s0 = inlined_call_operand.hbm [shape: f32[16,128], index: 0, kind: input, shape index: {}]
  %s1 = inlined_call_operand.hbm [shape: f32[16,128], index: 1, kind: input, shape index: {}]
  %s2 = inlined_call_operand.hbm [shape: f32[16,128], index: 2, kind: input, shape index: {}]
  %s3 = inlined_call_operand.hbm [shape: f32[16,128], index: 3, kind: output, shape index: {}]
  %s4 = sld [smem:[#allocation0]]
  $region34: #{tpu_custom_call.1} parent=0
    _
  %s6 = ssub.s32 1, %s4
  %s7 = scalar_select 0, %s6, %s4
  $region1: #{tpu_custom_call.1} parent=0
    #allocation2 [shape = 'u8[8192]{0}', space=vmem, size = 0x2000, scoped, tag = 'input window, operand 0, single buffered']
    #allocation3 [shape = 's32[1]{0}', space=sflag, size = 0x4, scoped, tag = 'scoped memory for tpu_custom_call.1']
    #allocation4 [shape = 's32[1]{0}', space=sflag, size = 0x4, scoped, tag = 'scoped memory for tpu_custom_call.1']
    #allocation5 [shape = 'u8[8192]{0}', space=vmem, size = 0x2000, scoped, tag = 'input window, operand 1, single buffered']
    #allocation6 [shape = 's32[1]{0}', space=sflag, size = 0x4, scoped, tag = 'scoped memory for tpu_custom_call.1']
    #allocation7 [shape = 'u8[8192]{0}', space=vmem, size = 0x2000, scoped, tag = 'input window, operand 2, single buffered']
    #allocation8 [shape = 'u8[8192]{0}', space=vmem, size = 0x2000, scoped, tag = 'output window, operand 0, single buffered']
    %8 = vsyncpa [#allocation3], 0
    %9 = vsyncpa [#allocation6], 0
    %10 = vsyncpa [#allocation4], 0
    // Predicated region
    $region2: #{tpu_custom_call.1} parent=1 // pred_check
      _
    $region3: #{tpu_custom_call.1} parent=1 // pred_check_branch
      %12 = sbr.rel (0) target = $region5
    $region4: #{tpu_custom_call.1} parent=1 // pred_region
      %14 = vsyncadd [#allocation3], 0
      %s15 = sshll.u32 %s0, 4
      %s16 = int_to_ptr.hbm [resolvable:$true] %s15
      %s17 = sshll.u32 [#allocation2], 4
      %s18 = int_to_ptr.vmem [resolvable:$true] %s17
      %23 = dma.hbm_to_vmem [thread:$0]  %s16, 256, %s18, [#allocation3], 128, 128, 8
    $region5: #{tpu_custom_call.1} parent=1 // pred_fallthru
      _
    // Predicated region
    $region6: #{tpu_custom_call.1} parent=1 // pred_check
      _
    $region7: #{tpu_custom_call.1} parent=1 // pred_check_branch
      %25 = sbr.rel (0) target = $region9
    $region8: #{tpu_custom_call.1} parent=1 // pred_region
      %27 = vsyncadd [#allocation6], 0
      %s28 = sshll.u32 %s1, 4
      %s29 = int_to_ptr.hbm [resolvable:$true] %s28
      %s30 = sshll.u32 [#allocation5], 4
      %s31 = int_to_ptr.vmem [resolvable:$true] %s30
      %36 = dma.hbm_to_vmem [thread:$0]  %s29, 256, %s31, [#allocation6], 128, 128, 8
    $region9: #{tpu_custom_call.1} parent=1 // pred_fallthru
      _
    // Predicated region
    $region10: #{tpu_custom_call.1} parent=1 // pred_check
      _
    $region11: #{tpu_custom_call.1} parent=1 // pred_check_branch
      %38 = sbr.rel (0) target = $region13
    $region12: #{tpu_custom_call.1} parent=1 // pred_region
      %40 = vsyncadd [#allocation6], 0
      %s41 = sshll.u32 %s2, 4
      %s42 = int_to_ptr.hbm [resolvable:$true] %s41
      %s43 = sshll.u32 [#allocation7], 4
      %s44 = int_to_ptr.vmem [resolvable:$true] %s43
      %49 = dma.hbm_to_vmem [thread:$0]  %s42, 256, %s44, [#allocation6], 128, 128, 8
    $region13: #{tpu_custom_call.1} parent=1 // pred_fallthru
      _
    // Predicated region
    $region14: #{tpu_custom_call.1} parent=1 // pred_check
      _
    $region15: #{tpu_custom_call.1} parent=1 // pred_check_branch
      %51 = sbr.rel (0) target = $region17
    $region16: #{tpu_custom_call.1} parent=1 // pred_region
      %53 = dma.done [#allocation3], 256
    $region17: #{tpu_custom_call.1} parent=1 // pred_fallthru
      _
    // Predicated region
    $region18: #{tpu_custom_call.1} parent=1 // pred_check
      _
    $region19: #{tpu_custom_call.1} parent=1 // pred_check_branch
      %55 = sbr.rel (0) target = $region21
    $region20: #{tpu_custom_call.1} parent=1 // pred_region
      %57 = dma.done [#allocation6], 256
    $region21: #{tpu_custom_call.1} parent=1 // pred_fallthru
      _
    // Predicated region
    $region22: #{tpu_custom_call.1} parent=1 // pred_check
      _
    $region23: #{tpu_custom_call.1} parent=1 // pred_check_branch
      %59 = sbr.rel (0) target = $region25
    $region24: #{tpu_custom_call.1} parent=1 // pred_region
      %61 = dma.done [#allocation6], 256
    $region25: #{tpu_custom_call.1} parent=1 // pred_fallthru
      _
    %v62 = vld [vmem:[#allocation2] sm:$0xff]
    %v63 = vld [vmem:[#allocation2 + $0x8] sm:$0xff]
    %v64 = vld [vmem:[#allocation5] sm:$0xff]
    %v65 = vld [vmem:[#allocation5 + $0x8] sm:$0xff]
    %v66 = vsub.f32 %v62, %v64
    %v67 = vsub.f32 %v63, %v65
    %v68 = vld [vmem:[#allocation7] sm:$0xff]
    %v69 = vld [vmem:[#allocation7 + $0x8] sm:$0xff]
    %v70 = vmul.f32 %v66, %v68
    %v71 = vmul.f32 %v67, %v69
    %72 = vst [vmem:[#allocation8] sm:$0xff] %v70
    %73 = vst [vmem:[#allocation8 + $0x8] sm:$0xff] %v71
    // Predicated region
    $region26: #{tpu_custom_call.1} parent=1 // pred_check
      _
    $region27: #{tpu_custom_call.1} parent=1 // pred_check_branch
      %75 = sbr.rel (0) target = $region29
    $region28: #{tpu_custom_call.1} parent=1 // pred_region
      %77 = vsyncadd [#allocation4], 0
      %s78 = sshll.u32 [#allocation8], 4
      %s79 = int_to_ptr.vmem [resolvable:$true] %s78
      %s80 = sshll.u32 %s3, 4
      %s81 = int_to_ptr.hbm [resolvable:$true] %s80
      %86 = dma.vmem_to_hbm [thread:$0]  %s79, 256, %s81, [#allocation4], 128, 128, 8
    $region29: #{tpu_custom_call.1} parent=1 // pred_fallthru
      _
    // Predicated region
    $region30: #{tpu_custom_call.1} parent=1 // pred_check
      _
    $region31: #{tpu_custom_call.1} parent=1 // pred_check_branch
      %88 = sbr.rel (0) target = $region33
    $region32: #{tpu_custom_call.1} parent=1 // pred_region
      %90 = dma.done [#allocation4], 256
    $region33: #{tpu_custom_call.1} parent=1 // pred_fallthru
      _
    %91 = vsyncpa [#allocation3], 1
    %92 = vsyncpa [#allocation6], 1
    %93 = vsyncpa [#allocation4], 1

</llo_original>
